<compile_context>
chip_gen: v5e
topology: v5e:2x2
jax: 0.10.0
libtpu: 0.0.40
codegen_flags: <defaults>
</compile_context>

<pallas_src>
import functools

import jax
import jax.numpy as jnp
from jax.experimental import pallas as pl
from jax.experimental.pallas import tpu as pltpu


def _round_up(x: int, m: int) -> int:
    return ((x + m - 1) // m) * m


def _vmem_budget_bytes() -> int:
    """~75% of physical VMEM; conservative 64 MiB fallback (v7x-safe)."""
    try:
        cap = int(pltpu.get_tpu_info().vmem_capacity_bytes)
    except Exception:
        cap = 64 << 20
    return min(int(cap * 3 // 4), 96 << 20)


def _compute_dtype(a_dtype) -> jnp.dtype:
    """bf16 math on bf16-VALU chips (v6e/v7x); f32 everywhere else."""
    if a_dtype == jnp.bfloat16:
        try:
            kind = jax.devices()[0].device_kind.lower()
        except Exception:
            kind = ""
        if "v5" not in kind:
            return jnp.bfloat16
    return jnp.float32


def _stable_factor_kernel(a_ref, rows_ref, cols_ref, o_ref, *, compute_dtype):
    # a_ref:    (tile_m, tile_n) tile of A_hat
    # rows_ref: (tile_m, 1)      per-row scales alpha[i] (f32 in HBM)
    # cols_ref: (1, tile_n)      per-column scales alpha[j] (f32 in HBM)
    # o_ref:    (tile_m, tile_n)
    a = a_ref[...].astype(compute_dtype)
    rows = rows_ref[...].astype(compute_dtype)
    cols = cols_ref[...].astype(compute_dtype)
    o_ref[...] = (a * rows * cols).astype(o_ref.dtype)


def stable_factor_reweight(
    a_hat: jax.Array, alpha: jax.Array, *, donate_a_hat: bool = False
) -> jax.Array:
    """Computes diag(alpha) @ a_hat @ diag(alpha) with a Pallas kernel."""
    n = a_hat.shape[0]
    assert a_hat.shape == (n, n), "StableFactor broadcasting implies square A_hat"
    assert alpha.shape == (n,)
    assert jnp.issubdtype(a_hat.dtype, jnp.floating), (
        "stable_factor_reweight supports float dtypes only (int would truncate)"
    )

    alpha32 = alpha.astype(jnp.float32)
    alpha_rows = alpha32.reshape(n, 1)  # row scale alpha[i]
    alpha_cols = alpha32.reshape(1, n)  # column scale alpha[j]

    itemsize = jnp.dtype(a_hat.dtype).itemsize
    sublane = max(8, 32 // max(itemsize, 1))  # 8 f32 / 16 bf16 / 32 fp8
    lane = 128
    n_lanes = _round_up(n, lane)
    n_sub = _round_up(n, sublane)

    budget = _vmem_budget_bytes()

    # VMEM accounting (bytes):
    #   A tile + out tile, double-buffered
    #   alpha_rows tile, double-buffered, lane-padded (tile_m, 1) -> tile_m*128 f32
    #   alpha_cols resident, sublane-padded (1, n) -> 8*n_lanes f32 (x2 for safety)
    cols_resident = 2 * 8 * n_lanes * 4

    def full_width_footprint(tm: int) -> int:
        per_buf = 2 * tm * n_lanes * itemsize + tm * 128 * 4
        return 2 * per_buf + cols_resident

    if full_width_footprint(sublane) <= budget:
        # ---- Full-width row-panel path (the common case). ----
        per_row = 2 * (2 * n_lanes * itemsize + 128 * 4)
        tile_m = (budget - cols_resident) // per_row
        tile_m = max(sublane, (tile_m // sublane) * sublane)
        # Megacore: guarantee >= 2 blocks on the parallel row axis when splittable.
        half_rows = max(sublane, _round_up(pl.cdiv(n, 2), sublane))
        tile_m = min(tile_m, half_rows, n_sub)
        if tile_m >= n:
            tile_m = n  # full-extent block (legal even if n % sublane != 0)

        grid = (pl.cdiv(n, tile_m),)
        in_specs = [
            pl.BlockSpec((tile_m, n), lambda i: (i, 0)),   # A_hat row panel
            pl.BlockSpec((tile_m, 1), lambda i: (i, 0)),   # alpha rows (tiled)
            pl.BlockSpec((1, n), lambda i: (0, 0)),        # alpha cols (resident)
        ]
        out_specs = pl.BlockSpec((tile_m, n), lambda i: (i, 0))
        dims = ("parallel",)
        footprint = full_width_footprint(tile_m)
    else:
        # ---- 2-D tiled fallback for matrices too large for a full-width panel. ----
        tile_m = min(512, n_sub)
        tile_n = min(2048, n_lanes)
        if tile_m >= n:
            tile_m = n
        if tile_n >= n:
            tile_n = n
        grid = (pl.cdiv(n, tile_m), pl.cdiv(n, tile_n))
        in_specs = [
            pl.BlockSpec((tile_m, tile_n), lambda i, j: (i, j)),
            pl.BlockSpec((tile_m, 1), lambda i, j: (i, 0)),
            pl.BlockSpec((1, tile_n), lambda i, j: (0, j)),
        ]
        out_specs = pl.BlockSpec((tile_m, tile_n), lambda i, j: (i, j))
        dims = ("parallel", "parallel")
        footprint = (
            2 * (2 * tile_m * tile_n * itemsize + tile_m * 128 * 4)
            + 2 * 8 * tile_n * 4
        )

    # Tight VMEM limit: actual footprint + small headroom, capped by the budget.
    vmem_limit = int(min(budget, max(footprint + (4 << 20), 16 << 20)))

    extra_kwargs = {}
    if donate_a_hat:
        # Safe with partial edge blocks because output stores are masked.
        extra_kwargs["input_output_aliases"] = {0: 0}

    kernel = functools.partial(
        _stable_factor_kernel, compute_dtype=_compute_dtype(a_hat.dtype)
    )

    return pl.pallas_call(
        kernel,
        out_shape=jax.ShapeDtypeStruct((n, n), a_hat.dtype),
        grid_spec=pltpu.PrefetchScalarGridSpec(
            num_scalar_prefetch=0,
            grid=grid,
            in_specs=in_specs,
            out_specs=out_specs,
        ),
        compiler_params=pltpu.CompilerParams(
            dimension_semantics=dims,
            vmem_limit_bytes=vmem_limit,
        ),
        **extra_kwargs,
    )(a_hat, alpha_rows, alpha_cols)


class StableFactor:
    """JAX/Pallas port of the PyTorch StableFactor module."""

    def __init__(self, num_source_nodes: int, num_target_nodes: int):
        # Deterministic init, matching torch.ones in the reference module.
        self.alpha_source = jnp.ones((num_source_nodes,), dtype=jnp.float32)
        self.alpha_target = jnp.ones((num_target_nodes,), dtype=jnp.float32)
        self.score_max = 0
        self.alpha_source_max = None
        self.alpha_target_max = None

    def forward(self, a_hat: jax.Array, net: str = "s") -> jax.Array:
        alpha = self.alpha_source if net == "s" else self.alpha_target
        return stable_factor_reweight(a_hat, alpha)

    __call__ = forward


if __name__ == "__main__":
    key = jax.random.PRNGKey(0)
    num_source_nodes = 128
    num_target_nodes = 64

    model = StableFactor(num_source_nodes, num_target_nodes)

    k1, k2, k3, k4, k5, k6 = jax.random.split(key, 6)
    # Non-trivial alpha so the kernel is exercised beyond multiplying by ones.
    model.alpha_source = jax.random.uniform(
        k1, (num_source_nodes,), dtype=jnp.float32, minval=0.5, maxval=1.5
    )

    a_hat_s = jax.random.uniform(
        k2, (num_source_nodes, num_source_nodes), dtype=jnp.float32
    )
    a_hat_t = jax.random.uniform(
        k3, (num_target_nodes, num_target_nodes), dtype=jnp.float32
    )

    out_s = model(a_hat_s, net="s")
    out_t = model(a_hat_t, net="t")

    # Size that is not a multiple of 8/128 (exercises masked partial edge blocks
    # and the >=2 row-block megacore split).
    n_odd = 200
    a_hat_odd = jax.random.uniform(k4, (n_odd, n_odd), dtype=jnp.float32)
    alpha_odd = jax.random.uniform(
        k5, (n_odd,), dtype=jnp.float32, minval=0.5, maxval=1.5
    )
    out_odd = stable_factor_reweight(a_hat_odd, alpha_odd)

    # bf16 smoke test (takes the reduced-precision compute path on v6e/v7x).
    n_bf = 96
    a_hat_bf = jax.random.uniform(k6, (n_bf, n_bf), dtype=jnp.float32).astype(
        jnp.bfloat16
    )
    alpha_bf = alpha_odd[:n_bf]
    out_bf = stable_factor_reweight(a_hat_bf, alpha_bf)

    jax.block_until_ready((out_s, out_t, out_odd, out_bf))

    # Reference (pure JAX, mirrors the PyTorch broadcast/transposes).
    def ref(a, alpha):
        alpha_col = alpha.reshape(-1, 1)
        return (alpha_col * (a * alpha_col).T).T

    assert out_s.shape == (num_source_nodes, num_source_nodes)
    assert out_t.shape == (num_target_nodes, num_target_nodes)
    assert out_odd.shape == (n_odd, n_odd)
    assert out_bf.shape == (n_bf, n_bf) and out_bf.dtype == jnp.bfloat16
    assert jnp.allclose(out_s, ref(a_hat_s, model.alpha_source), atol=1e-6, rtol=1e-6)
    assert jnp.allclose(out_t, a_hat_t, atol=1e-6, rtol=1e-6)  # alpha_target == ones
    assert jnp.allclose(out_odd, ref(a_hat_odd, alpha_odd), atol=1e-6, rtol=1e-6)
    assert jnp.allclose(
        out_bf.astype(jnp.float32),
        ref(a_hat_bf.astype(jnp.float32), alpha_bf),
        atol=5e-2,
        rtol=5e-2,
    )

    print("KERNEL_OK")
</pallas_src>

<mosaic_0001>
module attributes {stable_mosaic.version = 11 : i64} {
  func.func @_stable_factor_kernel(%arg0: i32, %arg1: memref<64x128xf32, #tpu.memory_space<vmem>>, %arg2: memref<64x1xf32, #tpu.memory_space<vmem>>, %arg3: memref<1x128xf32, #tpu.memory_space<vmem>>, %arg4: memref<64x128xf32, #tpu.memory_space<vmem>>) attributes {dimension_semantics = [#tpu.dimension_semantics<parallel>], iteration_bounds = array<i64: 2>, scalar_prefetch = 0 : i64, scratch_operands = 0 : i64, tpu.core_type = #tpu.core_type<tc>, window_params = [{transform_indices = @transform_0, window_bounds = array<i64: 64, 128>}, {transform_indices = @transform_1, window_bounds = array<i64: 64, 1>}, {pipeline_mode = #tpu.pipeline_mode<synchronous>, transform_indices = @transform_2, window_bounds = array<i64: 1, 128>}, {transform_indices = @transform_3, window_bounds = array<i64: 64, 128>}]} {
    %c0 = arith.constant 0 : index
    %c0_0 = arith.constant 0 : index
    %0 = vector.load %arg1[%c0, %c0_0] : memref<64x128xf32, #tpu.memory_space<vmem>>, vector<64x128xf32>
    %c0_1 = arith.constant 0 : index
    %c0_2 = arith.constant 0 : index
    %1 = vector.load %arg2[%c0_1, %c0_2] : memref<64x1xf32, #tpu.memory_space<vmem>>, vector<64x1xf32>
    %c0_3 = arith.constant 0 : index
    %c0_4 = arith.constant 0 : index
    %2 = vector.load %arg3[%c0_3, %c0_4] : memref<1x128xf32, #tpu.memory_space<vmem>>, vector<1x128xf32>
    %3 = vector.broadcast %1 : vector<64x1xf32> to vector<64x128xf32>
    %4 = arith.mulf %0, %3 : vector<64x128xf32>
    %5 = vector.broadcast %2 : vector<1x128xf32> to vector<64x128xf32>
    %6 = arith.mulf %4, %5 : vector<64x128xf32>
    %c0_5 = arith.constant 0 : index
    %c0_6 = arith.constant 0 : index
    %7 = vector.load %arg4[%c0_5, %c0_6] : memref<64x128xf32, #tpu.memory_space<vmem>>, vector<64x128xf32>
    tpu.vector_store %arg4[%c0_5, %c0_6], %6 {strides = array<i32>} : memref<64x128xf32, #tpu.memory_space<vmem>>, vector<64x128xf32>,
    return
  }
  func.func @transform_0(%arg0: i32) -> (i32, i32) {
    %c0_i32 = arith.constant 0 : i32
    %c0_i32_0 = arith.constant 0 : i32
    return %arg0, %c0_i32 : i32, i32
  }
  func.func @transform_1(%arg0: i32) -> (i32, i32) {
    %c0_i32 = arith.constant 0 : i32
    %c0_i32_0 = arith.constant 0 : i32
    return %arg0, %c0_i32 : i32, i32
  }
  func.func @transform_2(%arg0: i32) -> (i32, i32) {
    %c0_i32 = arith.constant 0 : i32
    %c0_i32_0 = arith.constant 0 : i32
    %c0_i32_1 = arith.constant 0 : i32
    return %c0_i32, %c0_i32_0 : i32, i32
  }
  func.func @transform_3(%arg0: i32) -> (i32, i32) {
    %c0_i32 = arith.constant 0 : i32
    %c0_i32_0 = arith.constant 0 : i32
    return %arg0, %c0_i32 : i32, i32
  }
}

</mosaic_0001>

<llo_original>
// kernel: tpu_custom_call.1
$region0: #{tpu_custom_call.1}
  #allocation0 [shape = 'u32[]', space=smem, size = 0x4, offset = 0x4, fixed_abs, tag = 'smem constant byte address 0x4 - core index']
  #allocation1 [shape = 'u32[72,128]{1,0:T(1,128)}', space=vmem, size = 0x9000, scoped, tag = 'internal scratch']
  %s0 = inlined_call_operand.vmem [shape: f32[128,128], index: 0, kind: input, shape index: {}]
  %s1 = inlined_call_operand.vmem [shape: f32[128,1], index: 1, kind: input, shape index: {}]
  %s2 = inlined_call_operand.vmem [shape: f32[1,128], index: 2, kind: input, shape index: {}]
  %s3 = inlined_call_operand.hbm [shape: f32[128,128], index: 3, kind: output, shape index: {}]
  %s4 = sld [smem:[#allocation0]]
  $region45: #{tpu_custom_call.1} parent=0
    _
  %s6 = ssub.s32 1, %s4
  %s7 = scalar_select 0, %s6, %s4
  $region1: #{tpu_custom_call.1} parent=0
    #allocation2 [shape = 'u8[65536]{0}', space=vmem, size = 0x10000, scoped, tag = 'output window, operand 0']
    #allocation3 [shape = 's32[2]{0}', space=sflag, size = 0x8, scoped, tag = 'scoped memory for tpu_custom_call.1']
    %8 = vsyncpa [#allocation3], 0
    %s9 = scalar_lea.sflag [#allocation3], 1
    %10 = vsyncpa %s9, 0
    loop: start=0, step=1, limit=4
    $region2: #{tpu_custom_call.1} parent=1 // loop_pre_header
      _
    $region3: #{tpu_custom_call.1} parent=1 // loop_header
      %s12 = sphi 0, %s16
      %p13 = scmp.ge.s32.totalorder %s12, 4
      %s22 = sphi 0, %s24
      %s25 = sphi 0, %s22
      %s26 = sphi 0, %s25
      %s42 = sphi 0, %s26
      %s48 = sphi 0, %s50
      %s51 = sphi 0, %s48
      %s52 = sphi 0, %s51
      %s68 = sphi 0, %s52
      %s72 = sphi 0, %s72
      %s74 = sphi 0, %s72
      %s75 = sphi 0, %s74
      %s89 = sphi 0, %s75
      %s95 = sphi 0, %s97
      %s98 = sphi 0, %s95
      %s99 = sphi 0, %s98
      %s115 = sphi 0, %s99
    $region4: #{tpu_custom_call.1} parent=1 // loop_header_branch
      %15 = sbr.rel (%p13) target = $region8
    $region5: #{tpu_custom_call.1} parent=1 // loop_body
      %s17 = ssub.s32 %s12, 1
      %s18 = ssub.s32 %s12, 2
      %s19 = sadd.s32 %s12, 1
      %s20 = ssub.s32 %s12, %s19
      %p21 = scmp.eq.s32.totalorder %s20, 0
      %s23 = sadd.s32 %s22, 1
      %s24 = scalar_select %p21, %s22, %s23
      %p27 = pneg %p21
      %p28 = scmp.eq.s32.totalorder %s12, 1
      %p29 = por %p27, %p28
      %p30 = scmp.ne.s32.totalorder %s22, %s25
      %p31 = scmp.eq.s32.totalorder %s12, 0
      %p32 = por %p30, %p31
      %p33 = scmp.ne.s32.totalorder %s22, %s25
      %p34 = scmp.eq.s32.totalorder %s17, 1
      %p35 = por %p33, %p34
      %p36 = scmp.ne.s32.totalorder %s25, %s26
      %p37 = scmp.eq.s32.totalorder %s17, 0
      %p38 = por %p36, %p37
      %p39 = scmp.ne.s32.totalorder %s25, %s26
      %p40 = scmp.eq.s32.totalorder %s18, 1
      %p41 = por %p39, %p40
      %p43 = scmp.ne.s32.totalorder %s26, %s42
      %p44 = scmp.eq.s32.totalorder %s18, 0
      %p45 = por %p43, %p44
      %s46 = ssub.s32 %s12, %s19
      %p47 = scmp.eq.s32.totalorder %s46, 0
      %s49 = sadd.s32 %s48, 1
      %s50 = scalar_select %p47, %s48, %s49
      %p53 = pneg %p47
      %p54 = scmp.eq.s32.totalorder %s12, 1
      %p55 = por %p53, %p54
      %p56 = scmp.ne.s32.totalorder %s48, %s51
      %p57 = scmp.eq.s32.totalorder %s12, 0
      %p58 = por %p56, %p57
      %p59 = scmp.ne.s32.totalorder %s48, %s51
      %p60 = scmp.eq.s32.totalorder %s17, 1
      %p61 = por %p59, %p60
      %p62 = scmp.ne.s32.totalorder %s51, %s52
      %p63 = scmp.eq.s32.totalorder %s17, 0
      %p64 = por %p62, %p63
      %p65 = scmp.ne.s32.totalorder %s51, %s52
      %p66 = scmp.eq.s32.totalorder %s18, 1
      %p67 = por %p65, %p66
      %p69 = scmp.ne.s32.totalorder %s52, %s68
      %p70 = scmp.eq.s32.totalorder %s18, 0
      %p71 = por %p69, %p70
      %s73 = sadd.s32 %s72, 1
      %p76 = scmp.eq.s32.totalorder %s12, 1
      %p77 = scmp.ne.s32.totalorder %s72, %s74
      %p78 = scmp.eq.s32.totalorder %s12, 0
      %p79 = por %p77, %p78
      %p80 = scmp.ne.s32.totalorder %s72, %s74
      %p81 = scmp.eq.s32.totalorder %s17, 1
      %p82 = por %p80, %p81
      %p83 = scmp.ne.s32.totalorder %s74, %s75
      %p84 = scmp.eq.s32.totalorder %s17, 0
      %p85 = por %p83, %p84
      %p86 = scmp.ne.s32.totalorder %s74, %s75
      %p87 = scmp.eq.s32.totalorder %s18, 1
      %p88 = por %p86, %p87
      %p90 = scmp.ne.s32.totalorder %s75, %s89
      %p91 = scmp.eq.s32.totalorder %s18, 0
      %p92 = por %p90, %p91
      %s93 = ssub.s32 %s12, %s19
      %p94 = scmp.eq.s32.totalorder %s93, 0
      %s96 = sadd.s32 %s95, 1
      %s97 = scalar_select %p94, %s95, %s96
      %p100 = pneg %p94
      %p101 = scmp.eq.s32.totalorder %s12, 1
      %p102 = por %p100, %p101
      %p103 = scmp.ne.s32.totalorder %s95, %s98
      %p104 = scmp.eq.s32.totalorder %s12, 0
      %p105 = por %p103, %p104
      %p106 = scmp.ne.s32.totalorder %s95, %s98
      %p107 = scmp.eq.s32.totalorder %s17, 1
      %p108 = por %p106, %p107
      %p109 = scmp.ne.s32.totalorder %s98, %s99
      %p110 = scmp.eq.s32.totalorder %s17, 0
      %p111 = por %p109, %p110
      %p112 = scmp.ne.s32.totalorder %s98, %s99
      %p113 = scmp.eq.s32.totalorder %s18, 1
      %p114 = por %p112, %p113
      %p116 = scmp.ne.s32.totalorder %s99, %s115
      %p117 = scmp.eq.s32.totalorder %s18, 0
      %p118 = por %p116, %p117
      %p119 = scmp.le.s32.totalorder 1, %s12
      %p120 = scmp.lt.s32.totalorder %s12, 3
      %p121 = pnand %p119, %p120
      %p122 = pneg %p121
      // Predicated region
      $region9: #{tpu_custom_call.1} parent=5 // pred_check
        _
      $region10: #{tpu_custom_call.1} parent=5 // pred_check_branch
        %124 = sbr.rel (%p121) target = $region12
      $region11: #{tpu_custom_call.1} parent=5 // pred_region
        %s125 = ssub.s32 %s12, 1
        // Predicated region
        $region13: #{tpu_custom_call.1} parent=11 // pred_check
          %p126 = pneg %p85
        $region14: #{tpu_custom_call.1} parent=11 // pred_check_branch
          %128 = sbr.rel (%p126) target = $region16
        $region15: #{tpu_custom_call.1} parent=11 // pred_region
          _
        $region16: #{tpu_custom_call.1} parent=11 // pred_fallthru
          _
      $region12: #{tpu_custom_call.1} parent=5 // pred_fallthru
        _
      %p129 = scmp.lt.s32.totalorder %s12, 2
      // Predicated region
      $region17: #{tpu_custom_call.1} parent=5 // pred_check
        %p130 = pneg %p129
      $region18: #{tpu_custom_call.1} parent=5 // pred_check_branch
        %132 = sbr.rel (%p130) target = $region20
      $region19: #{tpu_custom_call.1} parent=5 // pred_region
        // Predicated region
        $region21: #{tpu_custom_call.1} parent=19 // pred_check
          %p133 = pneg %p32
        $region22: #{tpu_custom_call.1} parent=19 // pred_check_branch
          %135 = sbr.rel (%p133) target = $region24
        $region23: #{tpu_custom_call.1} parent=19 // pred_region
          %s136 = smul.u32 8, %s12
          %p137 = scmp.lt.s32.totalorder %s136, 15
          %s138 = scalar_select %p137, %s136, 15
          %s139 = smul.addr %s138, 8
          %s140 = scalar_lea.vmem %s0, %s139
          %s141 = smul.u32 8, %s12
        $region24: #{tpu_custom_call.1} parent=19 // pred_fallthru
          _
        // Predicated region
        $region25: #{tpu_custom_call.1} parent=19 // pred_check
          %p142 = pneg %p58
        $region26: #{tpu_custom_call.1} parent=19 // pred_check_branch
          %144 = sbr.rel (%p142) target = $region28
        $region27: #{tpu_custom_call.1} parent=19 // pred_region
          %s145 = smul.u32 8, %s12
          %p146 = scmp.lt.s32.totalorder %s145, 15
          %s147 = scalar_select %p146, %s145, 15
          %s148 = smul.addr %s147, 8
          %s149 = scalar_lea.vmem %s1, %s148
          %s150 = smul.u32 8, %s12
        $region28: #{tpu_custom_call.1} parent=19 // pred_fallthru
          _
      $region20: #{tpu_custom_call.1} parent=5 // pred_fallthru
        _
      %p151 = scmp.le.s32.totalorder 1, %s12
      %p152 = scmp.lt.s32.totalorder %s12, 3
      %p153 = pnand %p151, %p152
      %p154 = pneg %p153
      // Predicated region
      $region29: #{tpu_custom_call.1} parent=5 // pred_check
        _
      $region30: #{tpu_custom_call.1} parent=5 // pred_check_branch
        %156 = sbr.rel (%p153) target = $region32
      $region31: #{tpu_custom_call.1} parent=5 // pred_region
        %s157 = ssub.s32 %s12, 1
        %s158 = smul.u32 8, %s17
        %p159 = scmp.lt.s32.totalorder %s158, 15
        %s160 = scalar_select %p159, %s158, 15
        %s161 = smul.addr %s160, 8
        %s162 = scalar_lea.vmem %s0, %s161
        %p163 = pneg %p38
        %p164 = pneg %p35
        %s165 = smul.u32 8, %s17
        %p166 = scmp.lt.s32.totalorder %s165, 15
        %s167 = scalar_select %p166, %s165, 15
        %s168 = smul.addr %s167, 8
        %s169 = scalar_lea.vmem %s1, %s168
        %p170 = pneg %p64
        %p171 = pneg %p61
        %p172 = pneg %p85
        %p173 = pneg %p82
        %p174 = pneg %p111
        %p175 = pneg %p108
        %s176 = sand.u32 %s98, 1
        %s177 = scalar_lea.sflag [#allocation3], %s176
        %s178 = sand.u32 %s98, 1
        %s179 = smul.addr %s178, 64
        %s180 = scalar_lea.vmem [#allocation2], %s179
        %s181 = smul.u32 8, %s17
        %p182 = scmp.lt.s32.totalorder %s181, 15
        %s183 = scalar_select %p182, %s181, 15
        %s184 = smul.addr %s183, 8
        %s185 = scalar_lea.vmem %s0, %s184
        %s186 = smul.u32 8, %s17
        %s187 = smul.u32 8, %s17
        %p188 = scmp.lt.s32.totalorder %s187, 15
        %s189 = scalar_select %p188, %s187, 15
        %s190 = smul.addr %s189, 8
        %s191 = scalar_lea.vmem %s1, %s190
        %s192 = smul.u32 8, %s17
        %s193 = smul.u32 8, %s17
        %v194 = vld [vmem:[%s185] sm:$0xff]
        %v195 = vld [vmem:[%s185 + $0x8] sm:$0xff]
        %v196 = vld [vmem:[%s185 + $0x10] sm:$0xff]
        %v197 = vld [vmem:[%s185 + $0x18] sm:$0xff]
        %v198 = vld [vmem:[%s185 + $0x20] sm:$0xff]
        %v199 = vld [vmem:[%s185 + $0x28] sm:$0xff]
        %v200 = vld [vmem:[%s185 + $0x30] sm:$0xff]
        %v201 = vld [vmem:[%s185 + $0x38] sm:$0xff]
        %v202 = vld [vmem:[%s191] sm:$0xff]
        %v203 = vld [vmem:[%s191 + $0x8] sm:$0xff]
        %v204 = vld [vmem:[%s191 + $0x10] sm:$0xff]
        %v205 = vld [vmem:[%s191 + $0x18] sm:$0xff]
        %v206 = vld [vmem:[%s191 + $0x20] sm:$0xff]
        %v207 = vld [vmem:[%s191 + $0x28] sm:$0xff]
        %v208 = vld [vmem:[%s191 + $0x30] sm:$0xff]
        %v209 = vld [vmem:[%s191 + $0x38] sm:$0xff]
        %v210 = vld [vmem:[%s2] sm:$0x1]
        %212 = vset.pattern.permute.xlu0 0
        %213 = vperm.xlu0 %212, %v202
        %v214 = vpop.permute.xlu0 %213
        %217 = vset.pattern.permute.xlu0 0
        %218 = vperm.xlu0 %217, %v203
        %v219 = vpop.permute.xlu0 %218
        %222 = vset.pattern.permute.xlu0 0
        %223 = vperm.xlu0 %222, %v204
        %v224 = vpop.permute.xlu0 %223
        %227 = vset.pattern.permute.xlu0 0
        %228 = vperm.xlu0 %227, %v205
        %v229 = vpop.permute.xlu0 %228
        %232 = vset.pattern.permute.xlu0 0
        %233 = vperm.xlu0 %232, %v206
        %v234 = vpop.permute.xlu0 %233
        %237 = vset.pattern.permute.xlu0 0
        %238 = vperm.xlu0 %237, %v207
        %v239 = vpop.permute.xlu0 %238
        %242 = vset.pattern.permute.xlu0 0
        %243 = vperm.xlu0 %242, %v208
        %v244 = vpop.permute.xlu0 %243
        %247 = vset.pattern.permute.xlu0 0
        %248 = vperm.xlu0 %247, %v209
        %v249 = vpop.permute.xlu0 %248
        %v251 = vmul.f32 %v194, %v214
        %v252 = vmul.f32 %v195, %v219
        %v253 = vmul.f32 %v196, %v224
        %v254 = vmul.f32 %v197, %v229
        %v255 = vmul.f32 %v198, %v234
        %v256 = vmul.f32 %v199, %v239
        %v257 = vmul.f32 %v200, %v244
        %v258 = vmul.f32 %v201, %v249
        %v260 = vperm.slane %v210, 0
        %v262 = vmul.f32 %v251, %v260
        %v263 = vmul.f32 %v252, %v260
        %v264 = vmul.f32 %v253, %v260
        %v265 = vmul.f32 %v254, %v260
        %v266 = vmul.f32 %v255, %v260
        %v267 = vmul.f32 %v256, %v260
        %v268 = vmul.f32 %v257, %v260
        %v269 = vmul.f32 %v258, %v260
        %270 = vst [vmem:[%s180] sm:$0xff] %v262
        %271 = vst [vmem:[%s180 + $0x8] sm:$0xff] %v263
        %272 = vst [vmem:[%s180 + $0x10] sm:$0xff] %v264
        %273 = vst [vmem:[%s180 + $0x18] sm:$0xff] %v265
        %274 = vst [vmem:[%s180 + $0x20] sm:$0xff] %v266
        %275 = vst [vmem:[%s180 + $0x28] sm:$0xff] %v267
        %276 = vst [vmem:[%s180 + $0x30] sm:$0xff] %v268
        %277 = vst [vmem:[%s180 + $0x38] sm:$0xff] %v269
        %s278 = sand.u32 %s98, 1
        %s279 = scalar_lea.sflag [#allocation3], %s278
        %s280 = sand.u32 %s98, 1
        %s281 = smul.addr %s280, 64
        %s282 = scalar_lea.vmem [#allocation2], %s281
        // Predicated region
        $region33: #{tpu_custom_call.1} parent=31 // pred_check
          %p283 = pneg %p108
        $region34: #{tpu_custom_call.1} parent=31 // pred_check_branch
          %285 = sbr.rel (%p283) target = $region36
        $region35: #{tpu_custom_call.1} parent=31 // pred_region
          %s286 = smul.u32 8, %s17
          %288 = vsyncadd %s279, 0
          %s289 = smul.addr %s286, 8
          %s290 = scalar_lea.hbm %s3, %s289
          %s291 = sshll.u32 %s282, 4
          %s292 = int_to_ptr.vmem [resolvable:$true] %s291
          %s293 = sshll.u32 %s290, 4
          %s294 = int_to_ptr.hbm [resolvable:$true] %s293
          %299 = dma.vmem_to_hbm [thread:$0]  %s292, 1024, %s294, %s279, 128, 128, 8
        $region36: #{tpu_custom_call.1} parent=31 // pred_fallthru
          _
      $region32: #{tpu_custom_call.1} parent=5 // pred_fallthru
        _
      %p300 = scmp.le.s32.totalorder 2, %s12
      // Predicated region
      $region37: #{tpu_custom_call.1} parent=5 // pred_check
        %p301 = pneg %p300
      $region38: #{tpu_custom_call.1} parent=5 // pred_check_branch
        %303 = sbr.rel (%p301) target = $region40
      $region39: #{tpu_custom_call.1} parent=5 // pred_region
        %s304 = ssub.s32 %s12, 2
        // Predicated region
        $region41: #{tpu_custom_call.1} parent=39 // pred_check
          %p305 = pneg %p114
        $region42: #{tpu_custom_call.1} parent=39 // pred_check_branch
          %307 = sbr.rel (%p305) target = $region44
        $region43: #{tpu_custom_call.1} parent=39 // pred_region
          %s308 = sand.u32 %s99, 1
          %s309 = scalar_lea.sflag [#allocation3], %s308
          %s310 = sand.u32 %s99, 1
          %s311 = smul.addr %s310, 64
          %s312 = scalar_lea.vmem [#allocation2], %s311
          %314 = dma.done %s309, 1024
        $region44: #{tpu_custom_call.1} parent=39 // pred_fallthru
          _
      $region40: #{tpu_custom_call.1} parent=5 // pred_fallthru
        _
    $region6: #{tpu_custom_call.1} parent=1 // loop_footer
      %s16 = sadd.s32 1, %s12
    $region7: #{tpu_custom_call.1} parent=1 // loop_footer_branch
      %11 = sbr.rel target = $region3
    $region8: #{tpu_custom_call.1} parent=1 // loop_exit
      _
    %315 = vsyncpa [#allocation3], 1
    %s316 = scalar_lea.sflag [#allocation3], 1
    %317 = vsyncpa %s316, 1

</llo_original>
